<compile_context>
chip_gen: v6e
topology: v6e:2x2x1
jax: 0.10.0
libtpu: 0.0.40
codegen_flags: <defaults>
</compile_context>

<pallas_src>
import functools

import jax
import jax.numpy as jnp
from jax import lax
from jax.experimental import pallas as pl
from jax.experimental.pallas import tpu as pltpu

BLOCK_SIZE = 8   # max sequence length T (matches the torch module)
LANE = 128       # TPU lane width


def _round_up(x, m):
    return (x + m - 1) // m * m


def _attn_lm_kernel(ids_ref, emb_ref, wqkv_ref, wf_ref, bf_ref, o_ref, *,
                    block_b, seq_len, head_size):
    """Processes `block_b` batch elements (M = block_b*seq_len token rows).

    ids_ref:  (M, 1)    int32 token ids (flattened batch-block)
    emb_ref:  (Vp, E)   token embedding table (vocab zero-padded to Vp)
    wqkv_ref: (E, 3H)   fused [q | k | v] projection weights (pre-transposed)
    wf_ref:   (H, Vp)   output head weight (vocab zero-padded, pre-transposed)
    bf_ref:   (1, Vp)   output head bias   (vocab zero-padded)
    o_ref:    (M, Vp)   logits out (lane-dense)
    """
    m_rows = block_b * seq_len
    vp = emb_ref.shape[0]
    h = head_size

    # --- embedding gather as an exact one-hot matmul (fused, MXU-friendly) ---
    ids = ids_ref[...]                                             # (M, 1)
    vocab_iota = lax.broadcasted_iota(jnp.int32, (m_rows, vp), 1)
    onehot = (vocab_iota == ids).astype(jnp.float32)               # (M, Vp)
    x = jnp.dot(onehot, emb_ref[...],
                preferred_element_type=jnp.float32)                # (M, E)

    # --- fused QKV projection: one (M, E) @ (E, 3H) matmul ---
    qkv = jnp.dot(x, wqkv_ref[...],
                  preferred_element_type=jnp.float32)              # (M, 3H)
    q = qkv[:, 0:h].reshape(block_b, seq_len, h)
    k = qkv[:, h:2 * h].reshape(block_b, seq_len, h)
    v = qkv[:, 2 * h:3 * h].reshape(block_b, seq_len, h)

    # --- attention scores; NO 1/sqrt(head_size) scaling (module fidelity) ---
    score = jnp.einsum("bth,bsh->bts", q, k,
                       preferred_element_type=jnp.float32)         # (Bb, T, T)

    # causal (tril) mask
    row = lax.broadcasted_iota(jnp.int32, score.shape, 1)
    col = lax.broadcasted_iota(jnp.int32, score.shape, 2)
    masked = jnp.where(col <= row, score, -jnp.inf)

    # softmax over the last axis (numerically stable).
    # NOTE: exact divide kept (not pl.reciprocal(approx=True)) to hold the
    # 1e-4 tolerance against the reference; the EUP win here is negligible.
    mx = jnp.max(masked, axis=-1, keepdims=True)
    e = jnp.exp(masked - mx)
    p = e / jnp.sum(e, axis=-1, keepdims=True)

    ctx = jnp.einsum("bts,bsh->bth", p, v,
                     preferred_element_type=jnp.float32)           # (Bb, T, H)
    ctx = ctx.reshape(m_rows, h)

    logits = jnp.dot(ctx, wf_ref[...],
                     preferred_element_type=jnp.float32) + bf_ref[...]
    o_ref[...] = logits.astype(o_ref.dtype)


def vanilla_attention_logits(idx, params, *, block_b=None):
    """idx: (B, T) int token ids, T <= BLOCK_SIZE. Returns (B, T, V) logits."""
    B, T = idx.shape
    emb = params["token_emb"]                  # (V, E)
    V, E = emb.shape
    H = params["wk"].shape[1]

    # ---- wrapper-side packing / padding (layout plumbing, not compute) ----
    Vp = _round_up(V, LANE)                                        # lane-dense
    emb_p = jnp.zeros((Vp, E), jnp.float32).at[:V].set(emb)
    wqkv = jnp.concatenate([params["wq"], params["wk"], params["wv"]],
                           axis=1)                                  # (E, 3H)
    wf_p = jnp.zeros((H, Vp), jnp.float32).at[:, :V].set(params["wf"])
    bf_p = jnp.zeros((1, Vp), jnp.float32).at[:, :V].set(params["bf"])

    # Batch-block size: target M = block_b*T >= 128 rows per grid step so the
    # MXU sees full-height tiles; large batches still get multiple parallel
    # grid steps (v7x has 2 TensorCores).  VMEM per step stays tiny here.
    if block_b is None:
        block_b = min(B, max(1, 128 // T))
    Bpad = _round_up(B, block_b)
    idx_p = jnp.zeros((Bpad, T), jnp.int32).at[:B].set(idx.astype(jnp.int32))
    ids = idx_p.reshape(Bpad * T, 1)

    M = block_b * T
    grid = (Bpad // block_b,)
    kernel = functools.partial(_attn_lm_kernel, block_b=block_b,
                               seq_len=T, head_size=H)

    out = pl.pallas_call(
        kernel,
        out_shape=jax.ShapeDtypeStruct((Bpad * T, Vp), jnp.float32),
        grid_spec=pltpu.PrefetchScalarGridSpec(
            num_scalar_prefetch=0,
            grid=grid,
            in_specs=[
                pl.BlockSpec((M, 1), lambda i: (i, 0)),        # token ids
                pl.BlockSpec((Vp, E), lambda i: (0, 0)),       # emb table
                pl.BlockSpec((E, 3 * H), lambda i: (0, 0)),    # fused qkv W
                pl.BlockSpec((H, Vp), lambda i: (0, 0)),       # head W
                pl.BlockSpec((1, Vp), lambda i: (0, 0)),       # head bias
            ],
            out_specs=pl.BlockSpec((M, Vp), lambda i: (i, 0)),
        ),
        compiler_params=pltpu.CompilerParams(
            dimension_semantics=("parallel",),
            vmem_limit_bytes=32 * 1024 * 1024),
    )(ids, emb_p, wqkv, wf_p, bf_p)

    # strip batch padding and vocab padding
    return out.reshape(Bpad, T, Vp)[:B, :, :V]


def forward(idx, params, targets=None):
    """Mirrors VanillaAttentionLM.forward. Returns (logits, loss)."""
    logits = vanilla_attention_logits(idx, params)
    loss = None
    if targets is not None:
        B, T, C = logits.shape
        flat_logits = logits.reshape(B * T, C)
        flat_targets = targets.reshape(B * T)
        logp = jax.nn.log_softmax(flat_logits, axis=-1)
        loss = -jnp.mean(jnp.take_along_axis(
            logp, flat_targets[:, None], axis=-1))
    return logits, loss


def init_params(key, vocab_size, emb_size, head_size):
    ks = jax.random.split(key, 7)
    # PyTorch nn.Linear stores weight as (out, in); we keep (in, out) so the
    # kernel computes x @ W directly.
    return {
        "token_emb": jax.random.normal(ks[0], (vocab_size, emb_size),
                                       jnp.float32),
        # position_emb is declared by the module but unused in forward();
        # kept for shape fidelity.
        "pos_emb": jax.random.normal(ks[1], (BLOCK_SIZE, emb_size),
                                     jnp.float32),
        "wk": jax.random.normal(ks[2], (emb_size, head_size), jnp.float32)
        * (1.0 / jnp.sqrt(emb_size)),
        "wq": jax.random.normal(ks[3], (emb_size, head_size), jnp.float32)
        * (1.0 / jnp.sqrt(emb_size)),
        "wv": jax.random.normal(ks[4], (emb_size, head_size), jnp.float32)
        * (1.0 / jnp.sqrt(emb_size)),
        "wf": jax.random.normal(ks[5], (head_size, vocab_size), jnp.float32)
        * (1.0 / jnp.sqrt(head_size)),
        "bf": jax.random.normal(ks[6], (1, vocab_size), jnp.float32) * 0.01,
    }


def _reference_forward(idx, params):
    """Pure-JAX reference for verification."""
    tok_emb = params["token_emb"][idx]
    k = tok_emb @ params["wk"]
    q = tok_emb @ params["wq"]
    v = tok_emb @ params["wv"]
    score = jnp.einsum("btd,bsd->bts", q, k)
    T = idx.shape[1]
    mask = jnp.tril(jnp.ones((T, T), jnp.bool_))
    score = jnp.where(mask[None], score, -jnp.inf)
    p = jax.nn.softmax(score, axis=-1)
    ctx = jnp.einsum("bts,bsd->btd", p, v)
    return ctx @ params["wf"] + params["bf"][0]


if __name__ == "__main__":
    key = jax.random.PRNGKey(0)
    vocab_size = 65   # shakespeare char vocab
    emb_size = 32
    head_size = 16
    B, T = 2, BLOCK_SIZE

    pkey, dkey, tkey, dkey2 = jax.random.split(key, 4)
    params = init_params(pkey, vocab_size, emb_size, head_size)
    idx = jax.random.randint(dkey, (B, T), 0, vocab_size, dtype=jnp.int32)
    targets = jax.random.randint(tkey, (B, T), 0, vocab_size, dtype=jnp.int32)

    logits, loss = forward(idx, params, targets=targets)
    logits = jax.block_until_ready(logits)
    loss = jax.block_until_ready(loss)

    ref = _reference_forward(idx, params)
    assert logits.shape == (B, T, vocab_size)
    assert jnp.allclose(logits, ref, atol=1e-4, rtol=1e-4), "mismatch (B=2)"
    assert jnp.isfinite(loss)

    # Larger batch: exercises batch-blocking, batch padding and a multi-step
    # parallel grid (the path that matters for real workloads / v7x).
    B2 = 20
    idx2 = jax.random.randint(dkey2, (B2, T), 0, vocab_size, dtype=jnp.int32)
    logits2, _ = forward(idx2, params)
    logits2 = jax.block_until_ready(logits2)
    ref2 = _reference_forward(idx2, params)
    assert logits2.shape == (B2, T, vocab_size)
    assert jnp.allclose(logits2, ref2, atol=1e-4, rtol=1e-4), "mismatch (B=20)"

    print("KERNEL_OK")
</pallas_src>

<mosaic_0001>
module attributes {stable_mosaic.version = 11 : i64} {
  func.func @_attn_lm_kernel(%arg0: i32, %arg1: memref<16x1xi32, #tpu.memory_space<vmem>>, %arg2: memref<128x32xf32, #tpu.memory_space<vmem>>, %arg3: memref<32x48xf32, #tpu.memory_space<vmem>>, %arg4: memref<16x128xf32, #tpu.memory_space<vmem>>, %arg5: memref<1x128xf32, #tpu.memory_space<vmem>>, %arg6: memref<16x128xf32, #tpu.memory_space<vmem>>) attributes {dimension_semantics = [#tpu.dimension_semantics<parallel>], iteration_bounds = array<i64: 1>, scalar_prefetch = 0 : i64, scratch_operands = 0 : i64, tpu.core_type = #tpu.core_type<tc>, window_params = [{transform_indices = @transform_0, window_bounds = array<i64: 16, 1>}, {pipeline_mode = #tpu.pipeline_mode<synchronous>, transform_indices = @transform_1, window_bounds = array<i64: 128, 32>}, {pipeline_mode = #tpu.pipeline_mode<synchronous>, transform_indices = @transform_2, window_bounds = array<i64: 32, 48>}, {pipeline_mode = #tpu.pipeline_mode<synchronous>, transform_indices = @transform_3, window_bounds = array<i64: 16, 128>}, {pipeline_mode = #tpu.pipeline_mode<synchronous>, transform_indices = @transform_4, window_bounds = array<i64: 1, 128>}, {transform_indices = @transform_5, window_bounds = array<i64: 16, 128>}]} {
    %c0 = arith.constant 0 : index
    %c0_0 = arith.constant 0 : index
    %0 = vector.load %arg1[%c0, %c0_0] : memref<16x1xi32, #tpu.memory_space<vmem>>, vector<16x1xi32>
    %1 = tpu.iota {dimensions = array<i32: 1>} : vector<16x128xi32>
    %2 = vector.broadcast %0 : vector<16x1xi32> to vector<16x128xi32>
    %3 = arith.cmpi eq, %1, %2 : vector<16x128xi32>
    %4 = arith.extui %3 : vector<16x128xi1> to vector<16x128xi32>
    %5 = arith.sitofp %4 : vector<16x128xi32> to vector<16x128xf32>
    %c0_1 = arith.constant 0 : index
    %c0_2 = arith.constant 0 : index
    %6 = vector.load %arg2[%c0_1, %c0_2] : memref<128x32xf32, #tpu.memory_space<vmem>>, vector<128x32xf32>
    %cst = arith.constant dense<0.000000e+00> : vector<16x32xf32>
    %7 = tpu.matmul %5, %6, %cst {dimension_numbers = #tpu.dot_dimension_numbers<[1], [0], [0], [1], [0, 0, 1, 1], [], []>} : vector<16x128xf32>, vector<128x32xf32>, vector<16x32xf32> -> vector<16x32xf32>
    %c0_3 = arith.constant 0 : index
    %c0_4 = arith.constant 0 : index
    %8 = vector.load %arg3[%c0_3, %c0_4] : memref<32x48xf32, #tpu.memory_space<vmem>>, vector<32x48xf32>
    %cst_5 = arith.constant dense<0.000000e+00> : vector<16x48xf32>
    %9 = tpu.matmul %7, %8, %cst_5 {dimension_numbers = #tpu.dot_dimension_numbers<[1], [0], [0], [1], [0, 0, 1, 1], [], []>} : vector<16x32xf32>, vector<32x48xf32>, vector<16x48xf32> -> vector<16x48xf32>
    %10 = vector.extract_strided_slice %9 {offsets = [0, 0], sizes = [16, 16], strides = [1, 1]} : vector<16x48xf32> to vector<16x16xf32>
    %11 = vector.shape_cast %10 : vector<16x16xf32> to vector<2x8x16xf32>
    %12 = vector.extract_strided_slice %9 {offsets = [0, 16], sizes = [16, 16], strides = [1, 1]} : vector<16x48xf32> to vector<16x16xf32>
    %13 = vector.shape_cast %12 : vector<16x16xf32> to vector<2x8x16xf32>
    %14 = vector.extract_strided_slice %9 {offsets = [0, 32], sizes = [16, 16], strides = [1, 1]} : vector<16x48xf32> to vector<16x16xf32>
    %15 = vector.shape_cast %14 : vector<16x16xf32> to vector<2x8x16xf32>
    "tpu.trace_start"() <{level = 10 : i32, message = "bth,bsh->bts"}> : () -> ()
    %cst_6 = arith.constant dense<0.000000e+00> : vector<2x8x8xf32>
    %16 = tpu.matmul %11, %13, %cst_6 {dimension_numbers = #tpu.dot_dimension_numbers<[2], [2], [1], [1], [0, 0, 0, 1, 1, 1], [0], [0]>} : vector<2x8x16xf32>, vector<2x8x16xf32>, vector<2x8x8xf32> -> vector<2x8x8xf32>
    "tpu.trace_stop"() : () -> ()
    %17 = tpu.iota {dimensions = array<i32: 1>} : vector<2x8x8xi32>
    %18 = tpu.iota {dimensions = array<i32: 2>} : vector<2x8x8xi32>
    %19 = arith.cmpi sle, %18, %17 : vector<2x8x8xi32>
    %cst_7 = arith.constant 0xFF800000 : f32
    %20 = vector.broadcast %cst_7 : f32 to vector<2x8x8xf32>
    %21 = arith.select %19, %16, %20 : vector<2x8x8xi1>, vector<2x8x8xf32>
    %cst_8 = arith.constant dense<0xFF800000> : vector<2x8xf32>
    %22 = vector.multi_reduction <maximumf>, %21, %cst_8 [2] : vector<2x8x8xf32> to vector<2x8xf32>
    %23 = vector.shape_cast %22 : vector<2x8xf32> to vector<2x8x1xf32>
    %24 = vector.broadcast %23 : vector<2x8x1xf32> to vector<2x8x8xf32>
    %25 = arith.subf %21, %24 : vector<2x8x8xf32>
    %26 = math.exp %25 : vector<2x8x8xf32>
    %cst_9 = arith.constant dense<0.000000e+00> : vector<2x8xf32>
    %27 = vector.multi_reduction <add>, %26, %cst_9 [2] : vector<2x8x8xf32> to vector<2x8xf32>
    %28 = vector.shape_cast %27 : vector<2x8xf32> to vector<2x8x1xf32>
    %29 = vector.broadcast %28 : vector<2x8x1xf32> to vector<2x8x8xf32>
    %30 = arith.divf %26, %29 : vector<2x8x8xf32>
    "tpu.trace_start"() <{level = 10 : i32, message = "bts,bsh->bth"}> : () -> ()
    %cst_10 = arith.constant dense<0.000000e+00> : vector<2x8x16xf32>
    %31 = tpu.matmul %30, %15, %cst_10 {dimension_numbers = #tpu.dot_dimension_numbers<[2], [1], [1], [2], [0, 0, 0, 1, 1, 2], [0], [0]>} : vector<2x8x8xf32>, vector<2x8x16xf32>, vector<2x8x16xf32> -> vector<2x8x16xf32>
    "tpu.trace_stop"() : () -> ()
    %32 = vector.shape_cast %31 : vector<2x8x16xf32> to vector<16x16xf32>
    %c0_11 = arith.constant 0 : index
    %c0_12 = arith.constant 0 : index
    %33 = vector.load %arg4[%c0_11, %c0_12] : memref<16x128xf32, #tpu.memory_space<vmem>>, vector<16x128xf32>
    %cst_13 = arith.constant dense<0.000000e+00> : vector<16x128xf32>
    %34 = tpu.matmul %32, %33, %cst_13 {dimension_numbers = #tpu.dot_dimension_numbers<[1], [0], [0], [1], [0, 0, 1, 1], [], []>} : vector<16x16xf32>, vector<16x128xf32>, vector<16x128xf32> -> vector<16x128xf32>
    %c0_14 = arith.constant 0 : index
    %c0_15 = arith.constant 0 : index
    %35 = vector.load %arg5[%c0_14, %c0_15] : memref<1x128xf32, #tpu.memory_space<vmem>>, vector<1x128xf32>
    %36 = vector.broadcast %35 : vector<1x128xf32> to vector<16x128xf32>
    %37 = arith.addf %34, %36 : vector<16x128xf32>
    %c0_16 = arith.constant 0 : index
    %c0_17 = arith.constant 0 : index
    %38 = vector.load %arg6[%c0_16, %c0_17] : memref<16x128xf32, #tpu.memory_space<vmem>>, vector<16x128xf32>
    tpu.vector_store %arg6[%c0_16, %c0_17], %37 {strides = array<i32>} : memref<16x128xf32, #tpu.memory_space<vmem>>, vector<16x128xf32>,
    return
  }
  func.func @transform_0(%arg0: i32) -> (i32, i32) {
    %c0_i32 = arith.constant 0 : i32
    %c0_i32_0 = arith.constant 0 : i32
    return %arg0, %c0_i32 : i32, i32
  }
  func.func @transform_1(%arg0: i32) -> (i32, i32) {
    %c0_i32 = arith.constant 0 : i32
    %c0_i32_0 = arith.constant 0 : i32
    %c0_i32_1 = arith.constant 0 : i32
    return %c0_i32, %c0_i32_0 : i32, i32
  }
  func.func @transform_2(%arg0: i32) -> (i32, i32) {
    %c0_i32 = arith.constant 0 : i32
    %c0_i32_0 = arith.constant 0 : i32
    %c0_i32_1 = arith.constant 0 : i32
    return %c0_i32, %c0_i32_0 : i32, i32
  }
  func.func @transform_3(%arg0: i32) -> (i32, i32) {
    %c0_i32 = arith.constant 0 : i32
    %c0_i32_0 = arith.constant 0 : i32
    %c0_i32_1 = arith.constant 0 : i32
    return %c0_i32, %c0_i32_0 : i32, i32
  }
  func.func @transform_4(%arg0: i32) -> (i32, i32) {
    %c0_i32 = arith.constant 0 : i32
    %c0_i32_0 = arith.constant 0 : i32
    %c0_i32_1 = arith.constant 0 : i32
    return %c0_i32, %c0_i32_0 : i32, i32
  }
  func.func @transform_5(%arg0: i32) -> (i32, i32) {
    %c0_i32 = arith.constant 0 : i32
    %c0_i32_0 = arith.constant 0 : i32
    return %arg0, %c0_i32 : i32, i32
  }
}

</mosaic_0001>

<llo_original>
// kernel: tpu_custom_call.1
$region0: #{tpu_custom_call.1}
  #allocation0 [shape = 'u32[]', space=smem, size = 0x4, offset = 0x4, fixed_abs, tag = 'smem constant byte address 0x4 - core index']
  #allocation1 [shape = 'u32[144,128]{1,0:T(1,128)}', space=vmem, size = 0x12000, scoped, tag = 'internal scratch']
  %s0 = inlined_call_operand.vmem [shape: s32[16,1], index: 0, kind: input, shape index: {}]
  %s1 = inlined_call_operand.vmem [shape: f32[128,32], index: 1, kind: input, shape index: {}]
  %s2 = inlined_call_operand.vmem [shape: f32[32,48], index: 2, kind: input, shape index: {}]
  %s3 = inlined_call_operand.vmem [shape: f32[16,128], index: 3, kind: input, shape index: {}]
  %s4 = inlined_call_operand.vmem [shape: f32[1,128], index: 4, kind: input, shape index: {}]
  %s5 = inlined_call_operand.hbm [shape: f32[16,128], index: 5, kind: output, shape index: {}]
  %s6 = sld [smem:[#allocation0]]
  $region30: #{tpu_custom_call.1} parent=0
    _
  %s8 = ssub.s32 1, %s6
  %s9 = scalar_select 0, %s8, %s6
  $region1: #{tpu_custom_call.1} parent=0
    #allocation2 [shape = 'u8[8192]{0}', space=vmem, size = 0x2000, scoped, tag = 'output window, operand 0, single buffered']
    #allocation3 [shape = 's32[1]{0}', space=sflag, size = 0x4, scoped, tag = 'scoped memory for tpu_custom_call.1']
    %10 = vsyncpa [#allocation3], 0
    // Predicated region
    $region2: #{tpu_custom_call.1} parent=1 // pred_check
      _
    $region3: #{tpu_custom_call.1} parent=1 // pred_check_branch
      %12 = sbr.rel (0) target = $region5
    $region4: #{tpu_custom_call.1} parent=1 // pred_region
      _
    $region5: #{tpu_custom_call.1} parent=1 // pred_fallthru
      _
    // Predicated region
    $region6: #{tpu_custom_call.1} parent=1 // pred_check
      _
    $region7: #{tpu_custom_call.1} parent=1 // pred_check_branch
      %14 = sbr.rel (0) target = $region9
    $region8: #{tpu_custom_call.1} parent=1 // pred_region
      _
    $region9: #{tpu_custom_call.1} parent=1 // pred_fallthru
      _
    // Predicated region
    $region10: #{tpu_custom_call.1} parent=1 // pred_check
      _
    $region11: #{tpu_custom_call.1} parent=1 // pred_check_branch
      %16 = sbr.rel (0) target = $region13
    $region12: #{tpu_custom_call.1} parent=1 // pred_region
      _
    $region13: #{tpu_custom_call.1} parent=1 // pred_fallthru
      _
    // Predicated region
    $region14: #{tpu_custom_call.1} parent=1 // pred_check
      _
    $region15: #{tpu_custom_call.1} parent=1 // pred_check_branch
      %18 = sbr.rel (0) target = $region17
    $region16: #{tpu_custom_call.1} parent=1 // pred_region
      _
    $region17: #{tpu_custom_call.1} parent=1 // pred_fallthru
      _
    // Predicated region
    $region18: #{tpu_custom_call.1} parent=1 // pred_check
      _
    $region19: #{tpu_custom_call.1} parent=1 // pred_check_branch
      %20 = sbr.rel (0) target = $region21
    $region20: #{tpu_custom_call.1} parent=1 // pred_region
      _
    $region21: #{tpu_custom_call.1} parent=1 // pred_fallthru
      _
    %v21 = vld [vmem:[%s0] sm:$0xff]
    %v22 = vld [vmem:[%s0 + $0x8] sm:$0xff]
    %v23 = vlaneseq
    %v24 = vand.u32 %v23, 127
    %25 = vset.pattern.permute.xlu0 0
    %26 = vperm.xlu0 %25, %v21
    %v27 = vpop.permute.xlu0 %26
    %28 = vset.pattern.permute.xlu0 0
    %29 = vperm.xlu0 %28, %v22
    %v30 = vpop.permute.xlu0 %29
    %vm31 = vcmp.eq.s32.totalorder %v24, %v27
    %vm32 = vcmp.eq.s32.totalorder %v24, %v30
    %v33 = vsel %vm31, 1, 0
    %v34 = vsel %vm32, 1, 0
    %v35 = vcvt.s32.f32 %v33
    %v36 = vcvt.s32.f32 %v34
    %v37 = vld [vmem:[%s1] sm:$0xff]
    %v38 = vld [vmem:[%s1 + $0x8] sm:$0xff]
    %v39 = vld [vmem:[%s1 + $0x10] sm:$0xff]
    %v40 = vld [vmem:[%s1 + $0x18] sm:$0xff]
    %v41 = vld [vmem:[%s1 + $0x20] sm:$0xff]
    %v42 = vld [vmem:[%s1 + $0x28] sm:$0xff]
    %v43 = vld [vmem:[%s1 + $0x30] sm:$0xff]
    %v44 = vld [vmem:[%s1 + $0x38] sm:$0xff]
    %v45 = vld [vmem:[%s1 + $0x40] sm:$0xff]
    %v46 = vld [vmem:[%s1 + $0x48] sm:$0xff]
    %v47 = vld [vmem:[%s1 + $0x50] sm:$0xff]
    %v48 = vld [vmem:[%s1 + $0x58] sm:$0xff]
    %v49 = vld [vmem:[%s1 + $0x60] sm:$0xff]
    %v50 = vld [vmem:[%s1 + $0x68] sm:$0xff]
    %v51 = vld [vmem:[%s1 + $0x70] sm:$0xff]
    %v52 = vld [vmem:[%s1 + $0x78] sm:$0xff]
    %53 = vmatprep.subr.mxu0 0.0
    %54 = vmatpush1.msra.mxu0 %v52
    %55 = vmatprep.subr.mxu0 0.0
    %56 = vmatpush1.msra.mxu0 %v51
    %57 = vmatprep.subr.mxu0 0.0
    %58 = vmatpush1.msra.mxu0 %v50
    %59 = vmatprep.subr.mxu0 0.0
    %60 = vmatpush1.msra.mxu0 %v49
    %61 = vmatprep.subr.mxu0 0.0
    %62 = vmatpush1.msra.mxu0 %v48
    %63 = vmatprep.subr.mxu0 0.0
    %64 = vmatpush1.msra.mxu0 %v47
    %65 = vmatprep.subr.mxu0 0.0
    %66 = vmatpush1.msra.mxu0 %v46
    %67 = vmatprep.subr.mxu0 0.0
    %68 = vmatpush1.msra.mxu0 %v45
    %69 = vmatprep.subr.mxu0 0.0
    %70 = vmatpush1.msra.mxu0 %v44
    %71 = vmatprep.subr.mxu0 0.0
    %72 = vmatpush1.msra.mxu0 %v43
    %73 = vmatprep.subr.mxu0 0.0
    %74 = vmatpush1.msra.mxu0 %v42
    %75 = vmatprep.subr.mxu0 0.0
    %76 = vmatpush1.msra.mxu0 %v41
    %77 = vmatprep.subr.mxu0 0.0
    %78 = vmatpush1.msra.mxu0 %v40
    %79 = vmatprep.subr.mxu0 0.0
    %80 = vmatpush1.msra.mxu0 %v39
    %81 = vmatprep.subr.mxu0 0.0
    %82 = vmatpush1.msra.mxu0 %v38
    %83 = vmatprep.subr.mxu0 0.0
    %84 = vmatpush1.msra.mxu0 %v37
    %85 = vmatprep.subr.mxu0 0.0
    %86 = vmatpush2.msra.mxu0 0.0
    %87 = vmatprep.subr.mxu0 0.0
    %88 = vmatpush2.msra.mxu0 0.0
    %89 = vmatprep.subr.mxu0 0.0
    %90 = vmatpush2.msra.mxu0 0.0
    %91 = vmatprep.subr.mxu0 0.0
    %92 = vmatpush2.msra.mxu0 0.0
    %93 = vmatprep.subr.mxu0 0.0
    %94 = vmatpush2.msra.mxu0 0.0
    %95 = vmatprep.subr.mxu0 0.0
    %96 = vmatpush2.msra.mxu0 0.0
    %97 = vmatprep.subr.mxu0 0.0
    %98 = vmatpush2.msra.mxu0 0.0
    %99 = vmatprep.subr.mxu0 0.0
    %100 = vmatpush2.msra.mxu0 0.0
    %101 = vmatprep.subr.mxu0 0.0
    %102 = vmatpush2.msra.mxu0 0.0
    %103 = vmatprep.subr.mxu0 0.0
    %104 = vmatpush2.msra.mxu0 0.0
    %105 = vmatprep.subr.mxu0 0.0
    %106 = vmatpush2.msra.mxu0 0.0
    %107 = vmatprep.subr.mxu0 0.0
    %108 = vmatpush2.msra.mxu0 0.0
    %109 = vmatprep.subr.mxu0 0.0
    %110 = vmatpush2.msra.mxu0 0.0
    %111 = vmatprep.subr.mxu0 0.0
    %112 = vmatpush2.msra.mxu0 0.0
    %113 = vmatprep.subr.mxu0 0.0
    %114 = vmatpush2.msra.mxu0 0.0
    %115 = vmatprep.subr.mxu0 0.0
    %116 = vmatpush2.msra.mxu0 0.0
    %117 = vmatprep.mubr.f32.mxu0 0.0
    %118 = vmatmul.mubr.f32.gmra.mxu0 %v35
    %v119 = vpop.f32.mrf.mxu0
    %v120 = vadd.f32 0.0, %v119
    %v121 = vpop.f32.mrf.mxu0
    %122 = vmatprep.mubr.f32.mxu0 0.0
    %123 = vmatmul.mubr.f32.gmra.mxu0 %v36
    %v124 = vpop.f32.mrf.mxu0
    %v125 = vadd.f32 0.0, %v124
    %v126 = vpop.f32.mrf.mxu0
    %127 = vdwg.mxu0
    %v128 = vld [vmem:[%s2] sm:$0xff]
    %v129 = vld [vmem:[%s2 + $0x8] sm:$0xff]
    %v130 = vld [vmem:[%s2 + $0x10] sm:$0xff]
    %v131 = vld [vmem:[%s2 + $0x18] sm:$0xff]
    %vm132 = vcmask 261120
    %v134 = vsel %vm132, %v120, 0
    %v137 = vsel %vm132, %v125, 0
    %139 = vmatprep.subr.mxu0 0.0
    %140 = vmatpush1.msra.mxu0 0.0
    %141 = vmatprep.subr.mxu0 0.0
    %142 = vmatpush1.msra.mxu0 0.0
    %143 = vmatprep.subr.mxu0 0.0
    %144 = vmatpush1.msra.mxu0 0.0
    %145 = vmatprep.subr.mxu0 0.0
    %146 = vmatpush1.msra.mxu0 0.0
    %147 = vmatprep.subr.mxu0 0.0
    %148 = vmatpush1.msra.mxu0 0.0
    %149 = vmatprep.subr.mxu0 0.0
    %150 = vmatpush1.msra.mxu0 0.0
    %151 = vmatprep.subr.mxu0 0.0
    %152 = vmatpush1.msra.mxu0 0.0
    %153 = vmatprep.subr.mxu0 0.0
    %154 = vmatpush1.msra.mxu0 0.0
    %155 = vmatprep.subr.mxu0 0.0
    %156 = vmatpush1.msra.mxu0 0.0
    %157 = vmatprep.subr.mxu0 0.0
    %158 = vmatpush1.msra.mxu0 0.0
    %159 = vmatprep.subr.mxu0 0.0
    %160 = vmatpush1.msra.mxu0 0.0
    %161 = vmatprep.subr.mxu0 0.0
    %162 = vmatpush1.msra.mxu0 0.0
    %163 = vmatprep.subr.mxu0 0.0
    %164 = vmatpush1.msra.mxu0 %v131
    %165 = vmatprep.subr.mxu0 0.0
    %166 = vmatpush1.msra.mxu0 %v130
    %167 = vmatprep.subr.mxu0 0.0
    %168 = vmatpush1.msra.mxu0 %v129
    %169 = vmatprep.subr.mxu0 0.0
    %170 = vmatpush1.msra.mxu0 %v128
    %171 = vmatprep.subr.mxu0 0.0
    %172 = vmatpush2.msra.mxu0 0.0
    %173 = vmatprep.subr.mxu0 0.0
    %174 = vmatpush2.msra.mxu0 0.0
    %175 = vmatprep.subr.mxu0 0.0
    %176 = vmatpush2.msra.mxu0 0.0
    %177 = vmatprep.subr.mxu0 0.0
    %178 = vmatpush2.msra.mxu0 0.0
    %179 = vmatprep.subr.mxu0 0.0
    %180 = vmatpush2.msra.mxu0 0.0
    %181 = vmatprep.subr.mxu0 0.0
    %182 = vmatpush2.msra.mxu0 0.0
    %183 = vmatprep.subr.mxu0 0.0
    %184 = vmatpush2.msra.mxu0 0.0
    %185 = vmatprep.subr.mxu0 0.0
    %186 = vmatpush2.msra.mxu0 0.0
    %187 = vmatprep.subr.mxu0 0.0
    %188 = vmatpush2.msra.mxu0 0.0
    %189 = vmatprep.subr.mxu0 0.0
    %190 = vmatpush2.msra.mxu0 0.0
    %191 = vmatprep.subr.mxu0 0.0
    %192 = vmatpush2.msra.mxu0 0.0
    %193 = vmatprep.subr.mxu0 0.0
    %194 = vmatpush2.msra.mxu0 0.0
    %195 = vmatprep.subr.mxu0 0.0
    %196 = vmatpush2.msra.mxu0 0.0
    %197 = vmatprep.subr.mxu0 0.0
    %198 = vmatpush2.msra.mxu0 0.0
    %199 = vmatprep.subr.mxu0 0.0
    %200 = vmatpush2.msra.mxu0 0.0
    %201 = vmatprep.subr.mxu0 0.0
    %202 = vmatpush2.msra.mxu0 0.0
    %203 = vmatprep.mubr.f32.mxu0 0.0
    %204 = vmatmul.mubr.f32.gmra.mxu0 %v134
    %v205 = vpop.f32.mrf.mxu0
    %v206 = vadd.f32 0.0, %v205
    %v207 = vpop.f32.mrf.mxu0
    %208 = vmatprep.mubr.f32.mxu0 0.0
    %209 = vmatmul.mubr.f32.gmra.mxu0 %v137
    %v210 = vpop.f32.mrf.mxu0
    %v211 = vadd.f32 0.0, %v210
    %v212 = vpop.f32.mrf.mxu0
    %213 = vdwg.mxu0
    %215 = vrot.lane.b32.xlu0 %v206, 112
    %v216 = vpop.permute.xlu0 %215
    %vm217 = vcmask 130048
    %v218 = vsel %vm217, %v206, 0
    %v220 = vsel %vm217, %v216, 0
    %222 = vmatprep.subr.mxu0 0.0
    %223 = vmatpush1.xpose.msra.mxu0 0.0
    %224 = vmatprep.subr.mxu0 0.0
    %225 = vmatpush1.xpose.msra.mxu0 0.0
    %226 = vmatprep.subr.mxu0 0.0
    %227 = vmatpush1.xpose.msra.mxu0 0.0
    %228 = vmatprep.subr.mxu0 0.0
    %229 = vmatpush1.xpose.msra.mxu0 0.0
    %230 = vmatprep.subr.mxu0 0.0
    %231 = vmatpush1.xpose.msra.mxu0 0.0
    %232 = vmatprep.subr.mxu0 0.0
    %233 = vmatpush1.xpose.msra.mxu0 0.0
    %234 = vmatprep.subr.mxu0 0.0
    %235 = vmatpush1.xpose.msra.mxu0 0.0
    %236 = vmatprep.subr.mxu0 0.0
    %237 = vmatpush1.xpose.msra.mxu0 0.0
    %238 = vmatprep.subr.mxu0 0.0
    %239 = vmatpush1.xpose.msra.mxu0 0.0
    %240 = vmatprep.subr.mxu0 0.0
    %241 = vmatpush1.xpose.msra.mxu0 0.0
    %242 = vmatprep.subr.mxu0 0.0
    %243 = vmatpush1.xpose.msra.mxu0 0.0
    %244 = vmatprep.subr.mxu0 0.0
    %245 = vmatpush1.xpose.msra.mxu0 0.0
    %246 = vmatprep.subr.mxu0 0.0
    %247 = vmatpush1.xpose.msra.mxu0 0.0
    %248 = vmatprep.subr.mxu0 0.0
    %249 = vmatpush1.xpose.msra.mxu0 0.0
    %250 = vmatprep.subr.mxu0 0.0
    %251 = vmatpush1.xpose.msra.mxu0 0.0
    %252 = vmatprep.subr.mxu0 0.0
    %253 = vmatpush1.xpose.msra.mxu0 %v220
    %254 = vmatprep.subr.mxu0 0.0
    %255 = vmatpush2.xpose.msra.mxu0 0.0
    %256 = vmatprep.subr.mxu0 0.0
    %257 = vmatpush2.xpose.msra.mxu0 0.0
    %258 = vmatprep.subr.mxu0 0.0
    %259 = vmatpush2.xpose.msra.mxu0 0.0
    %260 = vmatprep.subr.mxu0 0.0
    %261 = vmatpush2.xpose.msra.mxu0 0.0
    %262 = vmatprep.subr.mxu0 0.0
    %263 = vmatpush2.xpose.msra.mxu0 0.0
    %264 = vmatprep.subr.mxu0 0.0
    %265 = vmatpush2.xpose.msra.mxu0 0.0
    %266 = vmatprep.subr.mxu0 0.0
    %267 = vmatpush2.xpose.msra.mxu0 0.0
    %268 = vmatprep.subr.mxu0 0.0
    %269 = vmatpush2.xpose.msra.mxu0 0.0
    %270 = vmatprep.subr.mxu0 0.0
    %271 = vmatpush2.xpose.msra.mxu0 0.0
    %272 = vmatprep.subr.mxu0 0.0
    %273 = vmatpush2.xpose.msra.mxu0 0.0
    %274 = vmatprep.subr.mxu0 0.0
    %275 = vmatpush2.xpose.msra.mxu0 0.0
    %276 = vmatprep.subr.mxu0 0.0
    %277 = vmatpush2.xpose.msra.mxu0 0.0
    %278 = vmatprep.subr.mxu0 0.0
    %279 = vmatpush2.xpose.msra.mxu0 0.0
    %280 = vmatprep.subr.mxu0 0.0
    %281 = vmatpush2.xpose.msra.mxu0 0.0
    %282 = vmatprep.subr.mxu0 0.0
    %283 = vmatpush2.xpose.msra.mxu0 0.0
    %284 = vmatprep.subr.mxu0 0.0
    %285 = vmatpush2.xpose.msra.mxu0 0.0
    %286 = vmatprep.mubr.f32.mxu0 0.0
    %287 = vmatmul.mubr.f32.gmra.mxu0 %v218
    %v288 = vpop.f32.mrf.mxu0
    %v289 = vadd.f32 0.0, %v288
    %v290 = vpop.f32.mrf.mxu0
    %291 = vdwg.mxu0
    %293 = vrot.lane.b32.xlu0 %v211, 112
    %v294 = vpop.permute.xlu0 %293
    %v295 = vsel %vm217, %v211, 0
    %v297 = vsel %vm217, %v294, 0
    %299 = vmatprep.subr.mxu0 0.0
    %300 = vmatpush1.xpose.msra.mxu0 0.0
    %301 = vmatprep.subr.mxu0 0.0
    %302 = vmatpush1.xpose.msra.mxu0 0.0
    %303 = vmatprep.subr.mxu0 0.0
    %304 = vmatpush1.xpose.msra.mxu0 0.0
    %305 = vmatprep.subr.mxu0 0.0
    %306 = vmatpush1.xpose.msra.mxu0 0.0
    %307 = vmatprep.subr.mxu0 0.0
    %308 = vmatpush1.xpose.msra.mxu0 0.0
    %309 = vmatprep.subr.mxu0 0.0
    %310 = vmatpush1.xpose.msra.mxu0 0.0
    %311 = vmatprep.subr.mxu0 0.0
    %312 = vmatpush1.xpose.msra.mxu0 0.0
    %313 = vmatprep.subr.mxu0 0.0
    %314 = vmatpush1.xpose.msra.mxu0 0.0
    %315 = vmatprep.subr.mxu0 0.0
    %316 = vmatpush1.xpose.msra.mxu0 0.0
    %317 = vmatprep.subr.mxu0 0.0
    %318 = vmatpush1.xpose.msra.mxu0 0.0
    %319 = vmatprep.subr.mxu0 0.0
    %320 = vmatpush1.xpose.msra.mxu0 0.0
    %321 = vmatprep.subr.mxu0 0.0
    %322 = vmatpush1.xpose.msra.mxu0 0.0
    %323 = vmatprep.subr.mxu0 0.0
    %324 = vmatpush1.xpose.msra.mxu0 0.0
    %325 = vmatprep.subr.mxu0 0.0
    %326 = vmatpush1.xpose.msra.mxu0 0.0
    %327 = vmatprep.subr.mxu0 0.0
    %328 = vmatpush1.xpose.msra.mxu0 0.0
    %329 = vmatprep.subr.mxu0 0.0
    %330 = vmatpush1.xpose.msra.mxu0 %v297
    %331 = vmatprep.subr.mxu0 0.0
    %332 = vmatpush2.xpose.msra.mxu0 0.0
    %333 = vmatprep.subr.mxu0 0.0
    %334 = vmatpush2.xpose.msra.mxu0 0.0
    %335 = vmatprep.subr.mxu0 0.0
    %336 = vmatpush2.xpose.msra.mxu0 0.0
    %337 = vmatprep.subr.mxu0 0.0
    %338 = vmatpush2.xpose.msra.mxu0 0.0
    %339 = vmatprep.subr.mxu0 0.0
    %340 = vmatpush2.xpose.msra.mxu0 0.0
    %341 = vmatprep.subr.mxu0 0.0
    %342 = vmatpush2.xpose.msra.mxu0 0.0
    %343 = vmatprep.subr.mxu0 0.0
    %344 = vmatpush2.xpose.msra.mxu0 0.0
    %345 = vmatprep.subr.mxu0 0.0
    %346 = vmatpush2.xpose.msra.mxu0 0.0
    %347 = vmatprep.subr.mxu0 0.0
    %348 = vmatpush2.xpose.msra.mxu0 0.0
    %349 = vmatprep.subr.mxu0 0.0
    %350 = vmatpush2.xpose.msra.mxu0 0.0
    %351 = vmatprep.subr.mxu0 0.0
    %352 = vmatpush2.xpose.msra.mxu0 0.0
    %353 = vmatprep.subr.mxu0 0.0
    %354 = vmatpush2.xpose.msra.mxu0 0.0
    %355 = vmatprep.subr.mxu0 0.0
    %356 = vmatpush2.xpose.msra.mxu0 0.0
    %357 = vmatprep.subr.mxu0 0.0
    %358 = vmatpush2.xpose.msra.mxu0 0.0
    %359 = vmatprep.subr.mxu0 0.0
    %360 = vmatpush2.xpose.msra.mxu0 0.0
    %361 = vmatprep.subr.mxu0 0.0
    %362 = vmatpush2.xpose.msra.mxu0 0.0
    %363 = vmatprep.mubr.f32.mxu0 0.0
    %364 = vmatmul.mubr.f32.gmra.mxu0 %v295
    %v365 = vpop.f32.mrf.mxu0
    %v366 = vadd.f32 0.0, %v365
    %v367 = vpop.f32.mrf.mxu0
    %368 = vdwg.mxu0
    %v369 = vlaneseq
    %v370 = vshrl.u32 %v369, 7
    %vm371 = vcmp.le.s32.totalorder %v24, %v370
    %v372 = vsel %vm371, %v289, -inf
    %v373 = vsel %vm371, %v366, -inf
    %vm374 = vcmask 64512
    %v375 = vsel %vm374, %v372, -inf
    %376 = vmax.xlane.f32.xlu0 %v375
    %v377 = vpop.xlane.xlu0 %376
    %v378 = vsel %vm374, %v373, -inf
    %379 = vmax.xlane.f32.xlu0 %v378
    %v380 = vpop.xlane.xlu0 %379
    %v381 = vsub.f32 %v372, %v377
    %v382 = vsub.f32 %v373, %v380
    %v383 = vmul.f32 %v381, 1.442695
    %v384 = vpow.pop %v383
    %v385 = vmul.f32 %v382, 1.442695
    %v386 = vpow.pop %v385
    %v387 = vsel %vm374, %v384, 0.0
    %388 = vadd.xlane.f32.xlu0 %v387
    %v389 = vpop.xlane.xlu0 %388
    %v390 = vsel %vm374, %v386, 0.0
    %391 = vadd.xlane.f32.xlu0 %v390
    %v392 = vpop.xlane.xlu0 %391
    %v393 = vrcp.pop %v389
    %v394 = vmul.f32 %v384, %v393
    %v395 = vrcp.pop %v392
    %v396 = vmul.f32 %v386, %v395
    %397 = vrot.lane.b32.xlu0 %v206, 96
    %v398 = vpop.permute.xlu0 %397
    %v401 = vsel %vm374, %v394, 0
    %403 = vmatprep.subr.mxu0 0.0
    %404 = vmatpush1.msra.mxu0 0.0
    %405 = vmatprep.subr.mxu0 0.0
    %406 = vmatpush1.msra.mxu0 0.0
    %407 = vmatprep.subr.mxu0 0.0
    %408 = vmatpush1.msra.mxu0 0.0
    %409 = vmatprep.subr.mxu0 0.0
    %410 = vmatpush1.msra.mxu0 0.0
    %411 = vmatprep.subr.mxu0 0.0
    %412 = vmatpush1.msra.mxu0 0.0
    %413 = vmatprep.subr.mxu0 0.0
    %414 = vmatpush1.msra.mxu0 0.0
    %415 = vmatprep.subr.mxu0 0.0
    %416 = vmatpush1.msra.mxu0 0.0
    %417 = vmatprep.subr.mxu0 0.0
    %418 = vmatpush1.msra.mxu0 0.0
    %419 = vmatprep.subr.mxu0 0.0
    %420 = vmatpush1.msra.mxu0 0.0
    %421 = vmatprep.subr.mxu0 0.0
    %422 = vmatpush1.msra.mxu0 0.0
    %423 = vmatprep.subr.mxu0 0.0
    %424 = vmatpush1.msra.mxu0 0.0
    %425 = vmatprep.subr.mxu0 0.0
    %426 = vmatpush1.msra.mxu0 0.0
    %427 = vmatprep.subr.mxu0 0.0
    %428 = vmatpush1.msra.mxu0 0.0
    %429 = vmatprep.subr.mxu0 0.0
    %430 = vmatpush1.msra.mxu0 0.0
    %431 = vmatprep.subr.mxu0 0.0
    %432 = vmatpush1.msra.mxu0 0.0
    %433 = vmatprep.subr.mxu0 0.0
    %434 = vmatpush1.msra.mxu0 %v398
    %435 = vmatprep.subr.mxu0 0.0
    %436 = vmatpush2.msra.mxu0 0.0
    %437 = vmatprep.subr.mxu0 0.0
    %438 = vmatpush2.msra.mxu0 0.0
    %439 = vmatprep.subr.mxu0 0.0
    %440 = vmatpush2.msra.mxu0 0.0
    %441 = vmatprep.subr.mxu0 0.0
    %442 = vmatpush2.msra.mxu0 0.0
    %443 = vmatprep.subr.mxu0 0.0
    %444 = vmatpush2.msra.mxu0 0.0
    %445 = vmatprep.subr.mxu0 0.0
    %446 = vmatpush2.msra.mxu0 0.0
    %447 = vmatprep.subr.mxu0 0.0
    %448 = vmatpush2.msra.mxu0 0.0
    %449 = vmatprep.subr.mxu0 0.0
    %450 = vmatpush2.msra.mxu0 0.0
    %451 = vmatprep.subr.mxu0 0.0
    %452 = vmatpush2.msra.mxu0 0.0
    %453 = vmatprep.subr.mxu0 0.0
    %454 = vmatpush2.msra.mxu0 0.0
    %455 = vmatprep.subr.mxu0 0.0
    %456 = vmatpush2.msra.mxu0 0.0
    %457 = vmatprep.subr.mxu0 0.0
    %458 = vmatpush2.msra.mxu0 0.0
    %459 = vmatprep.subr.mxu0 0.0
    %460 = vmatpush2.msra.mxu0 0.0
    %461 = vmatprep.subr.mxu0 0.0
    %462 = vmatpush2.msra.mxu0 0.0
    %463 = vmatprep.subr.mxu0 0.0
    %464 = vmatpush2.msra.mxu0 0.0
    %465 = vmatprep.subr.mxu0 0.0
    %466 = vmatpush2.msra.mxu0 0.0
    %467 = vmatprep.mubr.f32.mxu0 0.0
    %468 = vmatmul.mubr.f32.gmra.mxu0 %v401
    %v469 = vpop.f32.mrf.mxu0
    %v470 = vadd.f32 0.0, %v469
    %v471 = vpop.f32.mrf.mxu0
    %472 = vdwg.mxu0
    %473 = vrot.lane.b32.xlu0 %v211, 96
    %v474 = vpop.permute.xlu0 %473
    %v477 = vsel %vm374, %v396, 0
    %479 = vmatprep.subr.mxu0 0.0
    %480 = vmatpush1.msra.mxu0 0.0
    %481 = vmatprep.subr.mxu0 0.0
    %482 = vmatpush1.msra.mxu0 0.0
    %483 = vmatprep.subr.mxu0 0.0
    %484 = vmatpush1.msra.mxu0 0.0
    %485 = vmatprep.subr.mxu0 0.0
    %486 = vmatpush1.msra.mxu0 0.0
    %487 = vmatprep.subr.mxu0 0.0
    %488 = vmatpush1.msra.mxu0 0.0
    %489 = vmatprep.subr.mxu0 0.0
    %490 = vmatpush1.msra.mxu0 0.0
    %491 = vmatprep.subr.mxu0 0.0
    %492 = vmatpush1.msra.mxu0 0.0
    %493 = vmatprep.subr.mxu0 0.0
    %494 = vmatpush1.msra.mxu0 0.0
    %495 = vmatprep.subr.mxu0 0.0
    %496 = vmatpush1.msra.mxu0 0.0
    %497 = vmatprep.subr.mxu0 0.0
    %498 = vmatpush1.msra.mxu0 0.0
    %499 = vmatprep.subr.mxu0 0.0
    %500 = vmatpush1.msra.mxu0 0.0
    %501 = vmatprep.subr.mxu0 0.0
    %502 = vmatpush1.msra.mxu0 0.0
    %503 = vmatprep.subr.mxu0 0.0
    %504 = vmatpush1.msra.mxu0 0.0
    %505 = vmatprep.subr.mxu0 0.0
    %506 = vmatpush1.msra.mxu0 0.0
    %507 = vmatprep.subr.mxu0 0.0
    %508 = vmatpush1.msra.mxu0 0.0
    %509 = vmatprep.subr.mxu0 0.0
    %510 = vmatpush1.msra.mxu0 %v474
    %511 = vmatprep.subr.mxu0 0.0
    %512 = vmatpush2.msra.mxu0 0.0
    %513 = vmatprep.subr.mxu0 0.0
    %514 = vmatpush2.msra.mxu0 0.0
    %515 = vmatprep.subr.mxu0 0.0
    %516 = vmatpush2.msra.mxu0 0.0
    %517 = vmatprep.subr.mxu0 0.0
    %518 = vmatpush2.msra.mxu0 0.0
    %519 = vmatprep.subr.mxu0 0.0
    %520 = vmatpush2.msra.mxu0 0.0
    %521 = vmatprep.subr.mxu0 0.0
    %522 = vmatpush2.msra.mxu0 0.0
    %523 = vmatprep.subr.mxu0 0.0
    %524 = vmatpush2.msra.mxu0 0.0
    %525 = vmatprep.subr.mxu0 0.0
    %526 = vmatpush2.msra.mxu0 0.0
    %527 = vmatprep.subr.mxu0 0.0
    %528 = vmatpush2.msra.mxu0 0.0
    %529 = vmatprep.subr.mxu0 0.0
    %530 = vmatpush2.msra.mxu0 0.0
    %531 = vmatprep.subr.mxu0 0.0
    %532 = vmatpush2.msra.mxu0 0.0
    %533 = vmatprep.subr.mxu0 0.0
    %534 = vmatpush2.msra.mxu0 0.0
    %535 = vmatprep.subr.mxu0 0.0
    %536 = vmatpush2.msra.mxu0 0.0
    %537 = vmatprep.subr.mxu0 0.0
    %538 = vmatpush2.msra.mxu0 0.0
    %539 = vmatprep.subr.mxu0 0.0
    %540 = vmatpush2.msra.mxu0 0.0
    %541 = vmatprep.subr.mxu0 0.0
    %542 = vmatpush2.msra.mxu0 0.0
    %543 = vmatprep.mubr.f32.mxu0 0.0
    %544 = vmatmul.mubr.f32.gmra.mxu0 %v477
    %v545 = vpop.f32.mrf.mxu0
    %v546 = vadd.f32 0.0, %v545
    %v547 = vpop.f32.mrf.mxu0
    %548 = vdwg.mxu0
    %v549 = vld [vmem:[%s3] sm:$0xff]
    %v550 = vld [vmem:[%s3 + $0x8] sm:$0xff]
    %v551 = vld [vmem:[%s4] sm:$0x1]
    %v553 = vlaneseq
    %v554 = vshrl.u32 %v553, 7
    %v555 = vsub.s32 0, %v554
    %v556 = vrot.slane %v551, %v555
    %v559 = vsel %vm217, %v470, 0
    %v562 = vsel %vm217, %v546, 0
    %564 = vmatprep.subr.mxu0 0.0
    %565 = vmatpush1.msra.mxu0 0.0
    %566 = vmatprep.subr.mxu0 0.0
    %567 = vmatpush1.msra.mxu0 0.0
    %568 = vmatprep.subr.mxu0 0.0
    %569 = vmatpush1.msra.mxu0 0.0
    %570 = vmatprep.subr.mxu0 0.0
    %571 = vmatpush1.msra.mxu0 0.0
    %572 = vmatprep.subr.mxu0 0.0
    %573 = vmatpush1.msra.mxu0 0.0
    %574 = vmatprep.subr.mxu0 0.0
    %575 = vmatpush1.msra.mxu0 0.0
    %576 = vmatprep.subr.mxu0 0.0
    %577 = vmatpush1.msra.mxu0 0.0
    %578 = vmatprep.subr.mxu0 0.0
    %579 = vmatpush1.msra.mxu0 0.0
    %580 = vmatprep.subr.mxu0 0.0
    %581 = vmatpush1.msra.mxu0 0.0
    %582 = vmatprep.subr.mxu0 0.0
    %583 = vmatpush1.msra.mxu0 0.0
    %584 = vmatprep.subr.mxu0 0.0
    %585 = vmatpush1.msra.mxu0 0.0
    %586 = vmatprep.subr.mxu0 0.0
    %587 = vmatpush1.msra.mxu0 0.0
    %588 = vmatprep.subr.mxu0 0.0
    %589 = vmatpush1.msra.mxu0 0.0
    %590 = vmatprep.subr.mxu0 0.0
    %591 = vmatpush1.msra.mxu0 0.0
    %592 = vmatprep.subr.mxu0 0.0
    %593 = vmatpush1.msra.mxu0 %v550
    %594 = vmatprep.subr.mxu0 0.0
    %595 = vmatpush1.msra.mxu0 %v549
    %596 = vmatprep.subr.mxu0 0.0
    %597 = vmatpush2.msra.mxu0 0.0
    %598 = vmatprep.subr.mxu0 0.0
    %599 = vmatpush2.msra.mxu0 0.0
    %600 = vmatprep.subr.mxu0 0.0
    %601 = vmatpush2.msra.mxu0 0.0
    %602 = vmatprep.subr.mxu0 0.0
    %603 = vmatpush2.msra.mxu0 0.0
    %604 = vmatprep.subr.mxu0 0.0
    %605 = vmatpush2.msra.mxu0 0.0
    %606 = vmatprep.subr.mxu0 0.0
    %607 = vmatpush2.msra.mxu0 0.0
    %608 = vmatprep.subr.mxu0 0.0
    %609 = vmatpush2.msra.mxu0 0.0
    %610 = vmatprep.subr.mxu0 0.0
    %611 = vmatpush2.msra.mxu0 0.0
    %612 = vmatprep.subr.mxu0 0.0
    %613 = vmatpush2.msra.mxu0 0.0
    %614 = vmatprep.subr.mxu0 0.0
    %615 = vmatpush2.msra.mxu0 0.0
    %616 = vmatprep.subr.mxu0 0.0
    %617 = vmatpush2.msra.mxu0 0.0
    %618 = vmatprep.subr.mxu0 0.0
    %619 = vmatpush2.msra.mxu0 0.0
    %620 = vmatprep.subr.mxu0 0.0
    %621 = vmatpush2.msra.mxu0 0.0
    %622 = vmatprep.subr.mxu0 0.0
    %623 = vmatpush2.msra.mxu0 0.0
    %624 = vmatprep.subr.mxu0 0.0
    %625 = vmatpush2.msra.mxu0 0.0
    %626 = vmatprep.subr.mxu0 0.0
    %627 = vmatpush2.msra.mxu0 0.0
    %628 = vmatprep.mubr.f32.mxu0 0.0
    %629 = vmatmul.mubr.f32.gmra.mxu0 %v559
    %v630 = vpop.f32.mrf.mxu0
    %v631 = vadd.f32 %v556, %v630
    %v632 = vpop.f32.mrf.mxu0
    %633 = vmatprep.mubr.f32.mxu0 0.0
    %634 = vmatmul.mubr.f32.gmra.mxu0 %v562
    %v635 = vpop.f32.mrf.mxu0
    %v636 = vadd.f32 %v556, %v635
    %v637 = vpop.f32.mrf.mxu0
    %638 = vdwg.mxu0
    %639 = vst [vmem:[#allocation2] sm:$0xff] %v631
    %640 = vst [vmem:[#allocation2 + $0x8] sm:$0xff] %v636
    // Predicated region
    $region22: #{tpu_custom_call.1} parent=1 // pred_check
      _
    $region23: #{tpu_custom_call.1} parent=1 // pred_check_branch
      %642 = sbr.rel (0) target = $region25
    $region24: #{tpu_custom_call.1} parent=1 // pred_region
      %s644 = ssub.s32 256, 256
      %645 = vsyncadd [#allocation3], %s644
      %s646 = sshll.u32 [#allocation2], 4
      %s647 = int_to_ptr.vmem [resolvable:$true] %s646
      %652 = dma.vmem_to_hbm [thread:$0]  %s647, 256, %s5, [#allocation3], 128, 128, 8
    $region25: #{tpu_custom_call.1} parent=1 // pred_fallthru
      _
    // Predicated region
    $region26: #{tpu_custom_call.1} parent=1 // pred_check
      _
    $region27: #{tpu_custom_call.1} parent=1 // pred_check_branch
      %654 = sbr.rel (0) target = $region29
    $region28: #{tpu_custom_call.1} parent=1 // pred_region
      %655 = dma.done [#allocation3], 256
    $region29: #{tpu_custom_call.1} parent=1 // pred_fallthru
      _
    %656 = vsyncpa [#allocation3], 1

</llo_original>
